<compile_context>
chip_gen: v6e
topology: v6e:2x2x1
jax: 0.10.0
libtpu: 0.0.40
codegen_flags: <defaults>
</compile_context>

<pallas_src>
import functools

import jax
import jax.numpy as jnp
from jax.experimental import pallas as pl
from jax.experimental.pallas import tpu as pltpu

LANES = 128
SUBLANES = 8


def _round_up(a, b):
    return (a + b - 1) // b * b


# --------------------------------------------------------------------------- kernels
def sorted_bucketize_kernel(x_ref, cb_ref, q_ref, idx_ref):
    """Nearest-value quantization for a SORTED per-lane codebook (flat layout).

    x_ref:   (TR, 128) f32 -- flat lane-dense view of x; lane c belongs to latent c % L
    cb_ref:  (V, 128)  f32 -- pre-tiled codebook, row v = value v for every lane's latent
    q_ref:   (TR, 128) f32 -- nearest codebook value
    idx_ref: (TR, 128) int -- index of that value along V
    """
    x = x_ref[...]
    cb = cb_ref[...]
    V = cb.shape[0]

    idx = jnp.zeros(x.shape, dtype=jnp.int32)
    val = jnp.broadcast_to(cb[0:1, :], x.shape)          # stride-0 sublane broadcast
    for v in range(V - 1):
        mid = 0.5 * (cb[v:v + 1, :] + cb[v + 1:v + 2, :])    # (1, 128), tiny
        gt = x > mid                  # strict '>' keeps the FIRST minimum on exact ties
        idx = idx + gt.astype(jnp.int32)
        val = jnp.where(gt, cb[v + 1:v + 2, :], val)
    q_ref[...] = val
    idx_ref[...] = idx.astype(idx_ref.dtype)


def distance_scan_kernel(x_ref, cb_ref, q_ref, idx_ref):
    """General first-minimum |x - value| scan (flat layout, no sortedness assumption)."""
    x = x_ref[...]
    cb = cb_ref[...]
    V = cb.shape[0]

    c0 = jnp.broadcast_to(cb[0:1, :], x.shape)
    best_d = jnp.abs(x - c0)
    best_i = jnp.zeros(x.shape, dtype=jnp.int32)
    best_v = c0
    for v in range(1, V):
        cv = jnp.broadcast_to(cb[v:v + 1, :], x.shape)
        d = jnp.abs(x - cv)
        take = d < best_d             # strict '<' keeps the FIRST minimum (torch argmin)
        best_d = jnp.where(take, d, best_d)
        best_i = jnp.where(take, jnp.int32(v), best_i)
        best_v = jnp.where(take, cv, best_v)
    q_ref[...] = best_v
    idx_ref[...] = best_i.astype(idx_ref.dtype)


def distance_scan_kernel_lb(x_ref, cb_ref, q_ref, idx_ref):
    """Fallback layout (latents on sublanes, batch on lanes) for L not dividing 128.

    x_ref: (L, TB) f32;  cb_ref: (L, V) f32
    """
    x = x_ref[...]
    cb = cb_ref[...]
    V = cb.shape[1]

    c0 = jnp.broadcast_to(cb[:, 0:1], x.shape)
    best_d = jnp.abs(x - c0)
    best_i = jnp.zeros(x.shape, dtype=jnp.int32)
    best_v = c0
    for v in range(1, V):
        cv = jnp.broadcast_to(cb[:, v:v + 1], x.shape)
        d = jnp.abs(x - cv)
        take = d < best_d
        best_d = jnp.where(take, d, best_d)
        best_i = jnp.where(take, jnp.int32(v), best_i)
        best_v = jnp.where(take, cv, best_v)
    q_ref[...] = best_v
    idx_ref[...] = best_i.astype(idx_ref.dtype)


# --------------------------------------------------------------------------- wrappers
def _quantize_flat(x, cb, sorted_values, index_dtype, max_tile_bytes):
    """Fast path: num_latents divides 128 -> flat lane-dense layout, zero layout copies
    when B*L is tile-aligned."""
    B, L = x.shape
    V = cb.shape[1]
    total = B * L
    rows_total = pl.cdiv(total, LANES)

    # Sublane alignment (x4 for 1-byte index dtypes so packed stores stay tile-aligned).
    row_align = SUBLANES * max(1, 4 // jnp.dtype(index_dtype).itemsize)

    # ~1 MiB f32 per input tile; double-buffered x+q+idx ~= 6 MiB -> fits every chip.
    max_tile_rows = max(row_align,
                        (max_tile_bytes // (4 * LANES)) // row_align * row_align)
    if rows_total > max_tile_rows:
        grid_steps = pl.cdiv(rows_total, max_tile_rows)
    elif rows_total >= max_tile_rows // 2:
        grid_steps = 2                 # let v7x's two TensorCores both work
    else:
        grid_steps = 1
    tile_rows = _round_up(pl.cdiv(rows_total, grid_steps), row_align)
    rows_pad = grid_steps * tile_rows

    # Flat lane-dense view: (B, L) row-major -> (rows, 128); lane c holds latent c % L.
    x_flat = jnp.reshape(x, (-1,))
    if rows_pad * LANES != total:      # only copies when the shape is not tile-aligned
        x_flat = jnp.pad(x_flat, (0, rows_pad * LANES - total))
    x2 = jnp.reshape(x_flat, (rows_pad, LANES))

    # Pre-tiled codebook: cb_tiled[v, c] = cb[c % L, v]  -> per-v stride-0 sublane reads.
    cb_tiled = jnp.tile(jnp.transpose(cb), (1, LANES // L))

    kernel = sorted_bucketize_kernel if sorted_values else distance_scan_kernel
    q2, idx2 = pl.pallas_call(
        kernel,
        out_shape=(
            jax.ShapeDtypeStruct((rows_pad, LANES), jnp.float32),
            jax.ShapeDtypeStruct((rows_pad, LANES), index_dtype),
        ),
        grid=(grid_steps,),
        in_specs=[
            pl.BlockSpec((tile_rows, LANES), lambda i: (i, 0)),   # pipelined batch tile
            pl.BlockSpec((V, LANES), lambda i: (0, 0)),           # codebook stays resident
        ],
        out_specs=(
            pl.BlockSpec((tile_rows, LANES), lambda i: (i, 0)),
            pl.BlockSpec((tile_rows, LANES), lambda i: (i, 0)),
        ),
        compiler_params=pltpu.CompilerParams(
            dimension_semantics=("parallel",),
            vmem_limit_bytes=32 << 20,
        ),
    )(x2, cb_tiled)

    q = jnp.reshape(jnp.reshape(q2, (-1,))[:total], (B, L))
    idx = jnp.reshape(jnp.reshape(idx2, (-1,))[:total], (B, L))
    return q, idx


def _quantize_transposed(x, cb, index_dtype, max_tile_bytes):
    """Fallback for num_latents not dividing 128: (L, B) layout (batch on lanes)."""
    # TODO(synk): this path pays one transpose each way; the flat lane-dense path only
    # covers L | 128.
    B, L = x.shape
    V = cb.shape[1]

    tb = max(LANES, min((max_tile_bytes // (4 * L)) // LANES * LANES,
                        _round_up(B, LANES)))
    b_tiles = pl.cdiv(B, tb)
    b_pad = b_tiles * tb

    x_t = jnp.transpose(x)
    if b_pad != B:
        x_t = jnp.pad(x_t, ((0, 0), (0, b_pad - B)))

    q_t, idx_t = pl.pallas_call(
        distance_scan_kernel_lb,
        out_shape=(
            jax.ShapeDtypeStruct((L, b_pad), jnp.float32),
            jax.ShapeDtypeStruct((L, b_pad), index_dtype),
        ),
        grid=(b_tiles,),
        in_specs=[
            pl.BlockSpec((L, tb), lambda i: (0, i)),
            pl.BlockSpec((L, V), lambda i: (0, 0)),
        ],
        out_specs=(
            pl.BlockSpec((L, tb), lambda i: (0, i)),
            pl.BlockSpec((L, tb), lambda i: (0, i)),
        ),
        compiler_params=pltpu.CompilerParams(
            dimension_semantics=("parallel",),
            vmem_limit_bytes=32 << 20,
        ),
    )(x_t, cb)

    return jnp.transpose(q_t[:, :B]), jnp.transpose(idx_t[:, :B])


def quantized_latent_forward(x, values_per_latent, *, assume_sorted_values=True,
                             index_dtype=jnp.int32, max_tile_bytes=1 << 20):
    """JAX/Pallas equivalent of QuantizedLatent.forward.

    x:                 (B, num_latents) float32
    values_per_latent: (num_latents, V) float32   (the nn.Parameter)
    assume_sorted_values: use the cheap midpoint-bucketization kernel (valid for the
        module's linspace init / optimize_values=False). Set False for arbitrary
        (possibly unsorted) codebooks.
    index_dtype: dtype of z_indices (int32 default; int8 is legal when V <= 127).
    """
    B, L = x.shape
    Lc, V = values_per_latent.shape
    assert L == Lc, (L, Lc)

    x = x.astype(jnp.float32)
    cb = values_per_latent.astype(jnp.float32)

    if LANES % L == 0:
        quantized, indices = _quantize_flat(x, cb, assume_sorted_values,
                                            index_dtype, max_tile_bytes)
    else:
        quantized, indices = _quantize_transposed(x, cb, index_dtype, max_tile_bytes)

    # Straight-through estimator: value == quantized, gradient flows to x.
    # TODO(synk): no custom VJP -> gradients w.r.t. values_per_latent are zero
    # (only matters for optimize_values=True training).
    z_hat = x + jax.lax.stop_gradient(quantized - x)

    return {
        "z_continuous": x,
        "z_quantized": quantized,
        "z_hat": z_hat,
        "z_indices": indices,
    }


def make_values_per_latent(num_latents, num_values_per_latent):
    """Deterministic parameter init, exactly as in __init__:
    torch.linspace(-1, 1, V) stacked per latent (all V equal so the stack is valid)."""
    if isinstance(num_values_per_latent, int):
        nvals = [num_values_per_latent] * num_latents
    else:
        nvals = num_values_per_latent
    rows = [jnp.linspace(-1.0, 1.0, nvals[i], dtype=jnp.float32)
            for i in range(num_latents)]
    return jnp.stack(rows, axis=0)                         # (num_latents, V)


def _reference_quantize(x, values_per_latent):
    """Pure-JAX reference matching torch quantize()."""
    L = values_per_latent.shape[0]
    dists = jnp.abs(x[..., None] - values_per_latent[None])          # (B, L, V)
    inds = jnp.argmin(dists, axis=-1).astype(jnp.int32)              # first-min tie-break
    vals = values_per_latent[jnp.arange(L)[None, :], inds]
    return vals, inds


if __name__ == "__main__":
    num_latents = 8
    num_values_per_latent = 5
    batch = 4

    values_per_latent = make_values_per_latent(num_latents, num_values_per_latent)
    key = jax.random.PRNGKey(0)
    x = jax.random.uniform(key, (batch, num_latents),
                           minval=-1.2, maxval=1.2, dtype=jnp.float32)
    ref_vals, ref_inds = _reference_quantize(x, values_per_latent)

    # 1) Default path: flat lane-dense layout + sorted-codebook bucketization kernel.
    fwd = jax.jit(quantized_latent_forward)
    outs = fwd(x, values_per_latent)
    jax.block_until_ready(outs["z_quantized"])
    jax.block_until_ready(outs["z_indices"])
    assert jnp.allclose(outs["z_quantized"], ref_vals)
    assert jnp.array_equal(outs["z_indices"], ref_inds)
    assert jnp.allclose(outs["z_hat"], ref_vals)
    assert jnp.allclose(outs["z_continuous"], x)

    # 2) General first-min distance-scan kernel (no sortedness assumption).
    fwd_scan = jax.jit(functools.partial(quantized_latent_forward,
                                         assume_sorted_values=False))
    outs_scan = fwd_scan(x, values_per_latent)
    jax.block_until_ready(outs_scan["z_quantized"])
    assert jnp.allclose(outs_scan["z_quantized"], ref_vals)
    assert jnp.array_equal(outs_scan["z_indices"], ref_inds)

    # 3) Fallback layout: num_latents (=24) does not divide 128.
    L2 = 24
    values2 = make_values_per_latent(L2, num_values_per_latent)
    x2 = jax.random.uniform(jax.random.PRNGKey(0), (batch, L2),
                            minval=-1.2, maxval=1.2, dtype=jnp.float32)
    ref_vals2, ref_inds2 = _reference_quantize(x2, values2)
    outs2 = jax.jit(quantized_latent_forward)(x2, values2)
    jax.block_until_ready(outs2["z_quantized"])
    assert jnp.allclose(outs2["z_quantized"], ref_vals2)
    assert jnp.array_equal(outs2["z_indices"], ref_inds2)

    print("KERNEL_OK")
</pallas_src>

<mosaic_0001>
module attributes {stable_mosaic.version = 11 : i64} {
  func.func @sorted_bucketize_kernel(%arg0: i32, %arg1: memref<8x128xf32, #tpu.memory_space<vmem>>, %arg2: memref<5x128xf32, #tpu.memory_space<vmem>>, %arg3: memref<8x128xf32, #tpu.memory_space<vmem>>, %arg4: memref<8x128xi32, #tpu.memory_space<vmem>>) attributes {dimension_semantics = [#tpu.dimension_semantics<parallel>], iteration_bounds = array<i64: 1>, scalar_prefetch = 0 : i64, scratch_operands = 0 : i64, tpu.core_type = #tpu.core_type<tc>, window_params = [{transform_indices = @transform_0, window_bounds = array<i64: 8, 128>}, {pipeline_mode = #tpu.pipeline_mode<synchronous>, transform_indices = @transform_1, window_bounds = array<i64: 5, 128>}, {transform_indices = @transform_2, window_bounds = array<i64: 8, 128>}, {transform_indices = @transform_3, window_bounds = array<i64: 8, 128>}]} {
    %c0 = arith.constant 0 : index
    %c0_0 = arith.constant 0 : index
    %0 = vector.load %arg1[%c0, %c0_0] : memref<8x128xf32, #tpu.memory_space<vmem>>, vector<8x128xf32>
    %c0_1 = arith.constant 0 : index
    %c0_2 = arith.constant 0 : index
    %1 = vector.load %arg2[%c0_1, %c0_2] : memref<5x128xf32, #tpu.memory_space<vmem>>, vector<5x128xf32>
    %c0_i32 = arith.constant 0 : i32
    %2 = vector.broadcast %c0_i32 : i32 to vector<8x128xi32>
    %3 = vector.extract_strided_slice %1 {offsets = [0, 0], sizes = [1, 128], strides = [1, 1]} : vector<5x128xf32> to vector<1x128xf32>
    %4 = vector.shape_cast %3 : vector<1x128xf32> to vector<1x128xf32>
    %5 = vector.broadcast %4 : vector<1x128xf32> to vector<8x128xf32>
    %6 = vector.extract_strided_slice %1 {offsets = [0, 0], sizes = [1, 128], strides = [1, 1]} : vector<5x128xf32> to vector<1x128xf32>
    %7 = vector.extract_strided_slice %1 {offsets = [1, 0], sizes = [1, 128], strides = [1, 1]} : vector<5x128xf32> to vector<1x128xf32>
    %8 = arith.addf %6, %7 : vector<1x128xf32>
    %cst = arith.constant 5.000000e-01 : f32
    %9 = vector.broadcast %cst : f32 to vector<1x128xf32>
    %10 = arith.mulf %9, %8 : vector<1x128xf32>
    %11 = vector.broadcast %10 : vector<1x128xf32> to vector<8x128xf32>
    %12 = arith.cmpf ogt, %0, %11 : vector<8x128xf32>
    %13 = arith.extui %12 : vector<8x128xi1> to vector<8x128xi32>
    %14 = arith.addi %2, %13 : vector<8x128xi32>
    %15 = vector.extract_strided_slice %1 {offsets = [1, 0], sizes = [1, 128], strides = [1, 1]} : vector<5x128xf32> to vector<1x128xf32>
    %16 = vector.shape_cast %15 : vector<1x128xf32> to vector<1x128xf32>
    %17 = vector.broadcast %16 : vector<1x128xf32> to vector<8x128xf32>
    %18 = arith.select %12, %17, %5 : vector<8x128xi1>, vector<8x128xf32>
    %19 = vector.extract_strided_slice %1 {offsets = [1, 0], sizes = [1, 128], strides = [1, 1]} : vector<5x128xf32> to vector<1x128xf32>
    %20 = vector.extract_strided_slice %1 {offsets = [2, 0], sizes = [1, 128], strides = [1, 1]} : vector<5x128xf32> to vector<1x128xf32>
    %21 = arith.addf %19, %20 : vector<1x128xf32>
    %cst_3 = arith.constant 5.000000e-01 : f32
    %22 = vector.broadcast %cst_3 : f32 to vector<1x128xf32>
    %23 = arith.mulf %22, %21 : vector<1x128xf32>
    %24 = vector.broadcast %23 : vector<1x128xf32> to vector<8x128xf32>
    %25 = arith.cmpf ogt, %0, %24 : vector<8x128xf32>
    %26 = arith.extui %25 : vector<8x128xi1> to vector<8x128xi32>
    %27 = arith.addi %14, %26 : vector<8x128xi32>
    %28 = vector.extract_strided_slice %1 {offsets = [2, 0], sizes = [1, 128], strides = [1, 1]} : vector<5x128xf32> to vector<1x128xf32>
    %29 = vector.shape_cast %28 : vector<1x128xf32> to vector<1x128xf32>
    %30 = vector.broadcast %29 : vector<1x128xf32> to vector<8x128xf32>
    %31 = arith.select %25, %30, %18 : vector<8x128xi1>, vector<8x128xf32>
    %32 = vector.extract_strided_slice %1 {offsets = [2, 0], sizes = [1, 128], strides = [1, 1]} : vector<5x128xf32> to vector<1x128xf32>
    %33 = vector.extract_strided_slice %1 {offsets = [3, 0], sizes = [1, 128], strides = [1, 1]} : vector<5x128xf32> to vector<1x128xf32>
    %34 = arith.addf %32, %33 : vector<1x128xf32>
    %cst_4 = arith.constant 5.000000e-01 : f32
    %35 = vector.broadcast %cst_4 : f32 to vector<1x128xf32>
    %36 = arith.mulf %35, %34 : vector<1x128xf32>
    %37 = vector.broadcast %36 : vector<1x128xf32> to vector<8x128xf32>
    %38 = arith.cmpf ogt, %0, %37 : vector<8x128xf32>
    %39 = arith.extui %38 : vector<8x128xi1> to vector<8x128xi32>
    %40 = arith.addi %27, %39 : vector<8x128xi32>
    %41 = vector.extract_strided_slice %1 {offsets = [3, 0], sizes = [1, 128], strides = [1, 1]} : vector<5x128xf32> to vector<1x128xf32>
    %42 = vector.shape_cast %41 : vector<1x128xf32> to vector<1x128xf32>
    %43 = vector.broadcast %42 : vector<1x128xf32> to vector<8x128xf32>
    %44 = arith.select %38, %43, %31 : vector<8x128xi1>, vector<8x128xf32>
    %45 = vector.extract_strided_slice %1 {offsets = [3, 0], sizes = [1, 128], strides = [1, 1]} : vector<5x128xf32> to vector<1x128xf32>
    %46 = vector.extract_strided_slice %1 {offsets = [4, 0], sizes = [1, 128], strides = [1, 1]} : vector<5x128xf32> to vector<1x128xf32>
    %47 = arith.addf %45, %46 : vector<1x128xf32>
    %cst_5 = arith.constant 5.000000e-01 : f32
    %48 = vector.broadcast %cst_5 : f32 to vector<1x128xf32>
    %49 = arith.mulf %48, %47 : vector<1x128xf32>
    %50 = vector.broadcast %49 : vector<1x128xf32> to vector<8x128xf32>
    %51 = arith.cmpf ogt, %0, %50 : vector<8x128xf32>
    %52 = arith.extui %51 : vector<8x128xi1> to vector<8x128xi32>
    %53 = arith.addi %40, %52 : vector<8x128xi32>
    %54 = vector.extract_strided_slice %1 {offsets = [4, 0], sizes = [1, 128], strides = [1, 1]} : vector<5x128xf32> to vector<1x128xf32>
    %55 = vector.shape_cast %54 : vector<1x128xf32> to vector<1x128xf32>
    %56 = vector.broadcast %55 : vector<1x128xf32> to vector<8x128xf32>
    %57 = arith.select %51, %56, %44 : vector<8x128xi1>, vector<8x128xf32>
    %c0_6 = arith.constant 0 : index
    %c0_7 = arith.constant 0 : index
    %58 = vector.load %arg3[%c0_6, %c0_7] : memref<8x128xf32, #tpu.memory_space<vmem>>, vector<8x128xf32>
    tpu.vector_store %arg3[%c0_6, %c0_7], %57 {strides = array<i32>} : memref<8x128xf32, #tpu.memory_space<vmem>>, vector<8x128xf32>,
    %c0_8 = arith.constant 0 : index
    %c0_9 = arith.constant 0 : index
    %59 = vector.load %arg4[%c0_8, %c0_9] : memref<8x128xi32, #tpu.memory_space<vmem>>, vector<8x128xi32>
    tpu.vector_store %arg4[%c0_8, %c0_9], %53 {strides = array<i32>} : memref<8x128xi32, #tpu.memory_space<vmem>>, vector<8x128xi32>,
    return
  }
  func.func @transform_0(%arg0: i32) -> (i32, i32) {
    %c0_i32 = arith.constant 0 : i32
    %c0_i32_0 = arith.constant 0 : i32
    return %arg0, %c0_i32 : i32, i32
  }
  func.func @transform_1(%arg0: i32) -> (i32, i32) {
    %c0_i32 = arith.constant 0 : i32
    %c0_i32_0 = arith.constant 0 : i32
    %c0_i32_1 = arith.constant 0 : i32
    return %c0_i32, %c0_i32_0 : i32, i32
  }
  func.func @transform_2(%arg0: i32) -> (i32, i32) {
    %c0_i32 = arith.constant 0 : i32
    %c0_i32_0 = arith.constant 0 : i32
    return %arg0, %c0_i32 : i32, i32
  }
  func.func @transform_3(%arg0: i32) -> (i32, i32) {
    %c0_i32 = arith.constant 0 : i32
    %c0_i32_0 = arith.constant 0 : i32
    return %arg0, %c0_i32 : i32, i32
  }
}

</mosaic_0001>

<llo_original>
// kernel: tile.9
$region0: #{tile.9}
  %s0 = inlined_call_operand.vmem [shape: f32[5,16,8], index: 0, kind: input, shape index: {}]
  %s1 = inlined_call_operand.vmem [shape: f32[5,128], index: 1, kind: output, shape index: {}]
  %s2 = smov 3
  %v3 = vld [vmem:[%s0] ss:$16 sm:%s2]
  %s4 = smov 12
  %v5 = vld [vmem:[%s0] ss:$16 sm:%s4]
  %vm6 = vcmask 1043458
  %v7 = vsel %vm6, %v5, %v3
  %s8 = scalar_lea.vmem %s0, 60
  %v9 = vld [vmem:[%s8] sm:$0x10]
  %vm10 = vcmask 1044484
  %v11 = vsel %vm10, %v9, %v7
  %vm12 = vcmask 64512
  %13 = vst.msk [vmem:[%s1] sm:$0x1f] %vm12, %v11
  %s14 = scalar_lea.vmem %s0, 15
  %s15 = smov 3
  %v16 = vld [vmem:[%s14] ss:$16 sm:%s15]
  %s17 = scalar_lea.vmem %s0, 15
  %s18 = smov 12
  %v19 = vld [vmem:[%s17] ss:$16 sm:%s18]
  %vm20 = vcmask 1043458
  %v21 = vsel %vm20, %v19, %v16
  %s22 = scalar_lea.vmem %s0, 75
  %v23 = vld [vmem:[%s22] sm:$0x10]
  %vm24 = vcmask 1044484
  %v25 = vsel %vm24, %v23, %v21
  %26 = vrot.lane.b32.xlu0 %v25, 120
  %v27 = vpop.permute.xlu0 %26
  %vm28 = vcmask 1048512
  %29 = vst.msk [vmem:[%s1] sm:$0x1f] %vm28, %v27
  %s30 = scalar_lea.vmem %s0, 14
  %s31 = smov 3
  %v32 = vld [vmem:[%s30] ss:$16 sm:%s31]
  %s33 = scalar_lea.vmem %s0, 14
  %s34 = smov 12
  %v35 = vld [vmem:[%s33] ss:$16 sm:%s34]
  %vm36 = vcmask 1043458
  %v37 = vsel %vm36, %v35, %v32
  %s38 = scalar_lea.vmem %s0, 74
  %v39 = vld [vmem:[%s38] sm:$0x10]
  %vm40 = vcmask 1044484
  %v41 = vsel %vm40, %v39, %v37
  %42 = vrot.lane.b32.xlu0 %v41, 112
  %v43 = vpop.permute.xlu0 %42
  %vm44 = vcmask 982912
  %45 = vst.msk [vmem:[%s1] sm:$0x1f] %vm44, %v43
  %s46 = scalar_lea.vmem %s0, 13
  %s47 = smov 3
  %v48 = vld [vmem:[%s46] ss:$16 sm:%s47]
  %s49 = scalar_lea.vmem %s0, 13
  %s50 = smov 12
  %v51 = vld [vmem:[%s49] ss:$16 sm:%s50]
  %vm52 = vcmask 1043458
  %v53 = vsel %vm52, %v51, %v48
  %s54 = scalar_lea.vmem %s0, 73
  %v55 = vld [vmem:[%s54] sm:$0x10]
  %vm56 = vcmask 1044484
  %v57 = vsel %vm56, %v55, %v53
  %58 = vrot.lane.b32.xlu0 %v57, 104
  %v59 = vpop.permute.xlu0 %58
  %vm60 = vcmask 917312
  %61 = vst.msk [vmem:[%s1] sm:$0x1f] %vm60, %v59
  %s62 = scalar_lea.vmem %s0, 12
  %s63 = smov 3
  %v64 = vld [vmem:[%s62] ss:$16 sm:%s63]
  %s65 = scalar_lea.vmem %s0, 12
  %s66 = smov 12
  %v67 = vld [vmem:[%s65] ss:$16 sm:%s66]
  %vm68 = vcmask 1043458
  %v69 = vsel %vm68, %v67, %v64
  %s70 = scalar_lea.vmem %s0, 72
  %v71 = vld [vmem:[%s70] sm:$0x10]
  %vm72 = vcmask 1044484
  %v73 = vsel %vm72, %v71, %v69
  %74 = vrot.lane.b32.xlu0 %v73, 96
  %v75 = vpop.permute.xlu0 %74
  %vm76 = vcmask 851712
  %77 = vst.msk [vmem:[%s1] sm:$0x1f] %vm76, %v75
  %s78 = scalar_lea.vmem %s0, 11
  %s79 = smov 3
  %v80 = vld [vmem:[%s78] ss:$16 sm:%s79]
  %s81 = scalar_lea.vmem %s0, 11
  %s82 = smov 12
  %v83 = vld [vmem:[%s81] ss:$16 sm:%s82]
  %vm84 = vcmask 1043458
  %v85 = vsel %vm84, %v83, %v80
  %s86 = scalar_lea.vmem %s0, 71
  %v87 = vld [vmem:[%s86] sm:$0x10]
  %vm88 = vcmask 1044484
  %v89 = vsel %vm88, %v87, %v85
  %90 = vrot.lane.b32.xlu0 %v89, 88
  %v91 = vpop.permute.xlu0 %90
  %vm92 = vcmask 786112
  %93 = vst.msk [vmem:[%s1] sm:$0x1f] %vm92, %v91
  %s94 = scalar_lea.vmem %s0, 10
  %s95 = smov 3
  %v96 = vld [vmem:[%s94] ss:$16 sm:%s95]
  %s97 = scalar_lea.vmem %s0, 10
  %s98 = smov 12
  %v99 = vld [vmem:[%s97] ss:$16 sm:%s98]
  %vm100 = vcmask 1043458
  %v101 = vsel %vm100, %v99, %v96
  %s102 = scalar_lea.vmem %s0, 70
  %v103 = vld [vmem:[%s102] sm:$0x10]
  %vm104 = vcmask 1044484
  %v105 = vsel %vm104, %v103, %v101
  %106 = vrot.lane.b32.xlu0 %v105, 80
  %v107 = vpop.permute.xlu0 %106
  %vm108 = vcmask 720512
  %109 = vst.msk [vmem:[%s1] sm:$0x1f] %vm108, %v107
  %s110 = scalar_lea.vmem %s0, 9
  %s111 = smov 3
  %v112 = vld [vmem:[%s110] ss:$16 sm:%s111]
  %s113 = scalar_lea.vmem %s0, 9
  %s114 = smov 12
  %v115 = vld [vmem:[%s113] ss:$16 sm:%s114]
  %vm116 = vcmask 1043458
  %v117 = vsel %vm116, %v115, %v112
  %s118 = scalar_lea.vmem %s0, 69
  %v119 = vld [vmem:[%s118] sm:$0x10]
  %vm120 = vcmask 1044484
  %v121 = vsel %vm120, %v119, %v117
  %122 = vrot.lane.b32.xlu0 %v121, 72
  %v123 = vpop.permute.xlu0 %122
  %vm124 = vcmask 654912
  %125 = vst.msk [vmem:[%s1] sm:$0x1f] %vm124, %v123
  %s126 = scalar_lea.vmem %s0, 8
  %s127 = smov 3
  %v128 = vld [vmem:[%s126] ss:$16 sm:%s127]
  %s129 = scalar_lea.vmem %s0, 8
  %s130 = smov 12
  %v131 = vld [vmem:[%s129] ss:$16 sm:%s130]
  %vm132 = vcmask 1043458
  %v133 = vsel %vm132, %v131, %v128
  %s134 = scalar_lea.vmem %s0, 68
  %v135 = vld [vmem:[%s134] sm:$0x10]
  %vm136 = vcmask 1044484
  %v137 = vsel %vm136, %v135, %v133
  %138 = vrot.lane.b32.xlu0 %v137, 64
  %v139 = vpop.permute.xlu0 %138
  %vm140 = vcmask 589312
  %141 = vst.msk [vmem:[%s1] sm:$0x1f] %vm140, %v139
  %s142 = scalar_lea.vmem %s0, 7
  %s143 = smov 3
  %v144 = vld [vmem:[%s142] ss:$16 sm:%s143]
  %s145 = scalar_lea.vmem %s0, 7
  %s146 = smov 12
  %v147 = vld [vmem:[%s145] ss:$16 sm:%s146]
  %vm148 = vcmask 1043458
  %v149 = vsel %vm148, %v147, %v144
  %s150 = scalar_lea.vmem %s0, 67
  %v151 = vld [vmem:[%s150] sm:$0x10]
  %vm152 = vcmask 1044484
  %v153 = vsel %vm152, %v151, %v149
  %154 = vrot.lane.b32.xlu0 %v153, 56
  %v155 = vpop.permute.xlu0 %154
  %vm156 = vcmask 523712
  %157 = vst.msk [vmem:[%s1] sm:$0x1f] %vm156, %v155
  %s158 = scalar_lea.vmem %s0, 6
  %s159 = smov 3
  %v160 = vld [vmem:[%s158] ss:$16 sm:%s159]
  %s161 = scalar_lea.vmem %s0, 6
  %s162 = smov 12
  %v163 = vld [vmem:[%s161] ss:$16 sm:%s162]
  %vm164 = vcmask 1043458
  %v165 = vsel %vm164, %v163, %v160
  %s166 = scalar_lea.vmem %s0, 66
  %v167 = vld [vmem:[%s166] sm:$0x10]
  %vm168 = vcmask 1044484
  %v169 = vsel %vm168, %v167, %v165
  %170 = vrot.lane.b32.xlu0 %v169, 48
  %v171 = vpop.permute.xlu0 %170
  %vm172 = vcmask 458112
  %173 = vst.msk [vmem:[%s1] sm:$0x1f] %vm172, %v171
  %s174 = scalar_lea.vmem %s0, 5
  %s175 = smov 3
  %v176 = vld [vmem:[%s174] ss:$16 sm:%s175]
  %s177 = scalar_lea.vmem %s0, 5
  %s178 = smov 12
  %v179 = vld [vmem:[%s177] ss:$16 sm:%s178]
  %vm180 = vcmask 1043458
  %v181 = vsel %vm180, %v179, %v176
  %s182 = scalar_lea.vmem %s0, 65
  %v183 = vld [vmem:[%s182] sm:$0x10]
  %vm184 = vcmask 1044484
  %v185 = vsel %vm184, %v183, %v181
  %186 = vrot.lane.b32.xlu0 %v185, 40
  %v187 = vpop.permute.xlu0 %186
  %vm188 = vcmask 392512
  %189 = vst.msk [vmem:[%s1] sm:$0x1f] %vm188, %v187
  %s190 = scalar_lea.vmem %s0, 4
  %s191 = smov 3
  %v192 = vld [vmem:[%s190] ss:$16 sm:%s191]
  %s193 = scalar_lea.vmem %s0, 4
  %s194 = smov 12
  %v195 = vld [vmem:[%s193] ss:$16 sm:%s194]
  %vm196 = vcmask 1043458
  %v197 = vsel %vm196, %v195, %v192
  %s198 = scalar_lea.vmem %s0, 64
  %v199 = vld [vmem:[%s198] sm:$0x10]
  %vm200 = vcmask 1044484
  %v201 = vsel %vm200, %v199, %v197
  %202 = vrot.lane.b32.xlu0 %v201, 32
  %v203 = vpop.permute.xlu0 %202
  %vm204 = vcmask 326912
  %205 = vst.msk [vmem:[%s1] sm:$0x1f] %vm204, %v203
  %s206 = scalar_lea.vmem %s0, 3
  %s207 = smov 3
  %v208 = vld [vmem:[%s206] ss:$16 sm:%s207]
  %s209 = scalar_lea.vmem %s0, 3
  %s210 = smov 12
  %v211 = vld [vmem:[%s209] ss:$16 sm:%s210]
  %vm212 = vcmask 1043458
  %v213 = vsel %vm212, %v211, %v208
  %s214 = scalar_lea.vmem %s0, 63
  %v215 = vld [vmem:[%s214] sm:$0x10]
  %vm216 = vcmask 1044484
  %v217 = vsel %vm216, %v215, %v213
  %218 = vrot.lane.b32.xlu0 %v217, 24
  %v219 = vpop.permute.xlu0 %218
  %vm220 = vcmask 261312
  %221 = vst.msk [vmem:[%s1] sm:$0x1f] %vm220, %v219
  %s222 = scalar_lea.vmem %s0, 2
  %s223 = smov 3
  %v224 = vld [vmem:[%s222] ss:$16 sm:%s223]
  %s225 = scalar_lea.vmem %s0, 2
  %s226 = smov 12
  %v227 = vld [vmem:[%s225] ss:$16 sm:%s226]
  %vm228 = vcmask 1043458
  %v229 = vsel %vm228, %v227, %v224
  %s230 = scalar_lea.vmem %s0, 62
  %v231 = vld [vmem:[%s230] sm:$0x10]
  %vm232 = vcmask 1044484
  %v233 = vsel %vm232, %v231, %v229
  %234 = vrot.lane.b32.xlu0 %v233, 16
  %v235 = vpop.permute.xlu0 %234
  %vm236 = vcmask 195712
  %237 = vst.msk [vmem:[%s1] sm:$0x1f] %vm236, %v235
  %s238 = scalar_lea.vmem %s0, 1
  %s239 = smov 3
  %v240 = vld [vmem:[%s238] ss:$16 sm:%s239]
  %s241 = scalar_lea.vmem %s0, 1
  %s242 = smov 12
  %v243 = vld [vmem:[%s241] ss:$16 sm:%s242]
  %vm244 = vcmask 1043458
  %v245 = vsel %vm244, %v243, %v240
  %s246 = scalar_lea.vmem %s0, 61
  %v247 = vld [vmem:[%s246] sm:$0x10]
  %vm248 = vcmask 1044484
  %v249 = vsel %vm248, %v247, %v245
  %250 = vrot.lane.b32.xlu0 %v249, 8
  %v251 = vpop.permute.xlu0 %250
  %vm252 = vcmask 130112
  %253 = vst.msk [vmem:[%s1] sm:$0x1f] %vm252, %v251

// kernel: quantized_latent_forward.1
$region0: #{quantized_latent_forward.1}
  #allocation0 [shape = 'u32[]', space=smem, size = 0x4, offset = 0x4, fixed_abs, tag = 'smem constant byte address 0x4 - core index']
  #allocation1 [shape = 'u32[144,128]{1,0:T(1,128)}', space=vmem, size = 0x12000, scoped, tag = 'internal scratch']
  %s0 = inlined_call_operand.vmem [shape: f32[8,128], index: 0, kind: input, shape index: {}]
  %s1 = inlined_call_operand.vmem [shape: f32[5,128], index: 1, kind: input, shape index: {}]
  %s2 = inlined_call_operand.vmem [shape: f32[8,128], index: 2, kind: output, shape index: {0}]
  %s3 = inlined_call_operand.vmem [shape: s32[8,128], index: 3, kind: output, shape index: {1}]
  %4 = xla_tuple %s2, %s3
  %s5 = sld [smem:[#allocation0]]
  $region26: #{quantized_latent_forward.1} parent=0
    _
  %s7 = ssub.s32 1, %s5
  %s8 = scalar_select 0, %s7, %s5
  // Predicated region
  $region2: #{quantized_latent_forward.1} parent=0 // pred_check
    _
  $region3: #{quantized_latent_forward.1} parent=0 // pred_check_branch
    %10 = sbr.rel (0) target = $region5
  $region4: #{quantized_latent_forward.1} parent=0 // pred_region
    _
  $region5: #{quantized_latent_forward.1} parent=0 // pred_fallthru
    _
  // Predicated region
  $region6: #{quantized_latent_forward.1} parent=0 // pred_check
    _
  $region7: #{quantized_latent_forward.1} parent=0 // pred_check_branch
    %12 = sbr.rel (0) target = $region9
  $region8: #{quantized_latent_forward.1} parent=0 // pred_region
    _
  $region9: #{quantized_latent_forward.1} parent=0 // pred_fallthru
    _
  %v13 = vld [vmem:[%s0] sm:$0xff]
  %v14 = vld [vmem:[%s1] sm:$0x1f]
  %v15 = vlaneseq
  %v16 = vshrl.u32 %v15, 7
  %v17 = vsub.s32 0, %v16
  %v18 = vrot.slane %v14, %v17
  %v20 = vrot.slane %v14, 1
  %v22 = vadd.f32 %v14, %v20
  %v23 = vmul.f32 %v22, 0.5
  %v24 = vlaneseq
  %v25 = vshrl.u32 %v24, 7
  %v26 = vsub.s32 0, %v25
  %v27 = vrot.slane %v23, %v26
  %vm28 = vcmp.gt.f32.partialorder %v13, %v27
  %v29 = vsel %vm28, 1, 0
  %v30 = vlaneseq
  %v31 = vshrl.u32 %v30, 7
  %v32 = vsub.s32 1, %v31
  %v33 = vrot.slane %v14, %v32
  %v34 = vsel %vm28, %v33, %v18
  %v35 = vlaneseq
  %v36 = vshrl.u32 %v35, 7
  %v37 = vsub.s32 1, %v36
  %v38 = vrot.slane %v23, %v37
  %vm39 = vcmp.gt.f32.partialorder %v13, %v38
  %v40 = vsel %vm39, 1, 0
  %v41 = vadd.s32 %v29, %v40
  %v42 = vlaneseq
  %v43 = vshrl.u32 %v42, 7
  %v44 = vsub.s32 2, %v43
  %v45 = vrot.slane %v14, %v44
  %v46 = vsel %vm39, %v45, %v34
  %v47 = vlaneseq
  %v48 = vshrl.u32 %v47, 7
  %v49 = vsub.s32 2, %v48
  %v50 = vrot.slane %v23, %v49
  %vm51 = vcmp.gt.f32.partialorder %v13, %v50
  %v52 = vsel %vm51, 1, 0
  %v53 = vadd.s32 %v41, %v52
  %v54 = vlaneseq
  %v55 = vshrl.u32 %v54, 7
  %v56 = vsub.s32 3, %v55
  %v57 = vrot.slane %v14, %v56
  %v58 = vsel %vm51, %v57, %v46
  %v59 = vlaneseq
  %v60 = vshrl.u32 %v59, 7
  %v61 = vsub.s32 3, %v60
  %v62 = vrot.slane %v23, %v61
  %vm63 = vcmp.gt.f32.partialorder %v13, %v62
  %v64 = vsel %vm63, 1, 0
  %v65 = vadd.s32 %v53, %v64
  %v66 = vlaneseq
  %v67 = vshrl.u32 %v66, 7
  %v68 = vsub.s32 4, %v67
  %v69 = vrot.slane %v14, %v68
  %v70 = vsel %vm63, %v69, %v58
  %71 = vst [vmem:[%s2] sm:$0xff] %v70
  %72 = vst [vmem:[%s3] sm:$0xff] %v65
  // Predicated region
  $region10: #{quantized_latent_forward.1} parent=0 // pred_check
    _
  $region11: #{quantized_latent_forward.1} parent=0 // pred_check_branch
    %74 = sbr.rel (0) target = $region13
  $region12: #{quantized_latent_forward.1} parent=0 // pred_region
    _
  $region13: #{quantized_latent_forward.1} parent=0 // pred_fallthru
    _
  // Predicated region
  $region14: #{quantized_latent_forward.1} parent=0 // pred_check
    _
  $region15: #{quantized_latent_forward.1} parent=0 // pred_check_branch
    %76 = sbr.rel (0) target = $region17
  $region16: #{quantized_latent_forward.1} parent=0 // pred_region
    _
  $region17: #{quantized_latent_forward.1} parent=0 // pred_fallthru
    _
  // Predicated region
  $region18: #{quantized_latent_forward.1} parent=0 // pred_check
    _
  $region19: #{quantized_latent_forward.1} parent=0 // pred_check_branch
    %78 = sbr.rel (0) target = $region21
  $region20: #{quantized_latent_forward.1} parent=0 // pred_region
    _
  $region21: #{quantized_latent_forward.1} parent=0 // pred_fallthru
    _
  // Predicated region
  $region22: #{quantized_latent_forward.1} parent=0 // pred_check
    _
  $region23: #{quantized_latent_forward.1} parent=0 // pred_check_branch
    %80 = sbr.rel (0) target = $region25
  $region24: #{quantized_latent_forward.1} parent=0 // pred_region
    _
  $region25: #{quantized_latent_forward.1} parent=0 // pred_fallthru
    _

</llo_original>
